<compile_context>
chip_gen: v7x
topology: tpu7x:2x2x1
jax: 0.10.0
libtpu: 0.0.40
codegen_flags: <defaults>
</compile_context>

<pallas_src>
import functools

import jax
import jax.numpy as jnp
from jax.experimental import pallas as pl
from jax.experimental.pallas import tpu as pltpu


# --------------------------------------------------------------------------- #
# Kernel body                                                                  #
# --------------------------------------------------------------------------- #
def _window_sum(x, k, L):
    """s[:, j] = sum_{d=0}^{k-1} x[:, j+d] via binary decomposition of k.

    Uses ~2*ceil(log2 k) lane rotations instead of k-1 linear rolls (keeps the
    XLU slot under budget on v7x).  Wrap-around lanes are harmless because only
    bin-start lanes (j % k == 0, so j + k - 1 < L) are consumed downstream.
    """
    def shl(v, d):                                   # shift left by d lanes
        return pltpu.roll(v, L - d, 1)

    res = None
    win, size, consumed, bit = x, 1, 0, 0
    while (1 << bit) <= k:
        if (k >> bit) & 1:
            part = win if consumed == 0 else shl(win, consumed)
            res = part if res is None else res + part
            consumed += 1 << bit
        if (1 << (bit + 1)) <= k:
            win = win + shl(win, size)
            size *= 2
        bit += 1
    return res


def _tp_kernel(x_ref, w_ref, aff_ref, lane_ref, o_ref, *, k, precision):
    """One batch-block: AvgPool1d -> 1x1 conv -> ReLU -> BN(eval) -> upsample."""
    L = x_ref.shape[-1]
    x = x_ref[...].astype(jnp.float32)                       # (NB*C_in, L), f32 compute

    # ---- AvgPool1d(k, stride=k), kept at full resolution -------------------
    # Block sums (log-step), then broadcast each bin-start value across its
    # bin.  The 1/k average factor is pre-folded into the phase masks
    # (lane_ref rows 0..k-1), so no extra full-block multiply is needed.
    s = _window_sum(x, k, L)
    pooled = lane_ref[0:1, :] * s                             # nonzero only at bin starts
    if k & (k - 1) == 0:                                      # power of two: log-step fill
        step = 1
        while step < k:
            pooled = pooled + pltpu.roll(pooled, step, 1)     # b[j] += b[j-step]
            step *= 2
    else:                                                     # general k: per-phase masks
        for r in range(1, k):
            pooled = pooled + lane_ref[r:r + 1, :] * pltpu.roll(s, r, 1)
    # pooled[:, j] == mean of bin j // k, replicated k times along lanes.

    # ---- Conv1d(kernel_size=1): block-diagonal channel mix on the MXU ------
    z = jnp.dot(w_ref[...], pooled, preferred_element_type=jnp.float32,
                precision=precision)
    z = z + aff_ref[:, 0:1]                                   # conv bias

    # ---- ReLU, eval-mode BatchNorm folded to scale/shift (dropout=identity) -
    y = jnp.maximum(z, 0.0) * aff_ref[:, 1:2] + aff_ref[:, 2:3]

    # ---- F.interpolate(scale_factor=k, mode='linear', align_corners=True) --
    # 3-tap stencil at stride k: out[:, j] = w_m1[j]*bin(q-1) + w_0[j]*bin(q)
    #                                       + w_p1[j]*bin(q+1),  q = j // k.
    # Boundary weights are exactly zero, so roll wrap-around never leaks.
    w_m1 = lane_ref[k + 0:k + 1, :]
    w_0 = lane_ref[k + 1:k + 2, :]
    w_p1 = lane_ref[k + 2:k + 3, :]
    if 1 < k < L:
        out = (w_0 * y
               + w_m1 * pltpu.roll(y, k, 1)                   # value of bin q-1
               + w_p1 * pltpu.roll(y, L - k, 1))              # value of bin q+1
    else:                                                     # k == 1 or L_p == 1
        out = w_0 * y
    o_ref[...] = out.astype(o_ref.dtype)


# --------------------------------------------------------------------------- #
# Constant tables & block-size heuristics                                      #
# --------------------------------------------------------------------------- #
def _lane_constants(L_out, k, dtype=jnp.float32):
    """Per-lane constants: k pooling phase masks (pre-scaled by 1/k) followed by
    the 3 align_corners interpolation stencil weights.  Shape (k+3, L_out)."""
    j = jnp.arange(L_out)
    masks = (j[None, :] % k == jnp.arange(k)[:, None]).astype(dtype) / k    # (k, L_out)

    L_p = L_out // k
    q = j // k
    if L_out > 1:
        src = j.astype(jnp.float32) * (L_p - 1) / (L_out - 1)
    else:
        src = jnp.zeros((L_out,), jnp.float32)
    i0 = jnp.floor(src).astype(jnp.int32)
    i1 = jnp.minimum(i0 + 1, L_p - 1)
    frac = src - i0.astype(jnp.float32)
    weights = []
    for d in (-1, 0, 1):
        weights.append((i0 == q + d).astype(jnp.float32) * (1.0 - frac)
                       + (i1 == q + d).astype(jnp.float32) * frac)
    weights = jnp.stack(weights, axis=0).astype(dtype)                      # (3, L_out)
    return jnp.concatenate([masks, weights], axis=0)                        # (k+3, L_out)


def _vmem_capacity_bytes():
    """Physical per-core VMEM; fall back to the tightest current part (v7x)."""
    try:
        return int(pltpu.get_tpu_info().vmem_capacity_bytes)
    except Exception:
        return 64 << 20


def _vmem_step_bytes(nb, C_in, C_out, L_out, k, in_itemsize, out_itemsize):
    """Honest per-grid-step VMEM estimate: double-buffered pipeline blocks for
    every operand PLUS ~8 block-sized f32 temporaries the body keeps live
    (x cast, window sums, pooled, roll results, z/y, out)."""
    rb_in, rb_out = nb * C_in, nb * C_out
    m = max(rb_in, rb_out)
    return (2 * rb_in * L_out * in_itemsize          # x pipeline buffers
            + 2 * rb_out * L_out * out_itemsize      # out pipeline buffers
            + 2 * rb_out * rb_in * 4                 # block-diag conv weight
            + 2 * rb_out * 3 * 4                     # bias | BN scale | BN shift
            + 2 * (k + 3) * L_out * 4                # lane constants
            + 8 * m * L_out * 4)                     # live in-kernel f32 temporaries


def _pick_batch_block(N, C_in, C_out, L_out, k, *, in_itemsize=4, out_itemsize=4,
                      row_align=8, row_cap=128, target_x_bytes=2 << 20,
                      vmem_budget=None):
    """Pick NB (batches per grid step):
       * honest VMEM accounting against a per-generation budget (1/4 physical),
       * block rows <= row_cap so the kron(I_NB, W) matmul waste stays far
         below the DMA roofline on every generation (v5e MXU is the tightest),
       * x block <= target_x_bytes (>=512-lane blocks already reach ~85% of the
         HBM roofline; bigger buys nothing),
       * prefer >= 4 grid steps (then >= 2) so v7x megacore sharding and DMA
         prologue/epilogue overlap have work.
    """
    if vmem_budget is None:
        vmem_budget = _vmem_capacity_bytes() // 4

    def rows_ok(nb):
        return nb == N or (nb * C_in % row_align == 0 and nb * C_out % row_align == 0)

    cands = [nb for nb in range(1, N + 1) if N % nb == 0 and rows_ok(nb)]
    if not cands:
        raise ValueError(f"no batch block of N={N} gives row counts aligned to "
                         f"{row_align} (C_in={C_in}, C_out={C_out})")
    fits = [nb for nb in cands
            if _vmem_step_bytes(nb, C_in, C_out, L_out, k, in_itemsize,
                                out_itemsize) <= vmem_budget]
    fits = fits or [min(cands)]
    for min_steps in (4, 2, 1):
        good = [nb for nb in fits
                if N // nb >= min_steps
                and nb * max(C_in, C_out) <= row_cap
                and nb * C_in * L_out * in_itemsize <= target_x_bytes]
        if good:
            return max(good)
    return min(fits)


# --------------------------------------------------------------------------- #
# Public wrapper                                                               #
# --------------------------------------------------------------------------- #
def temporal_pooling(x, conv_w, conv_b, bn_gamma, bn_beta, bn_mean, bn_var,
                     kernel_size=2, eps=1e-5, batch_block=None, io_dtype=None,
                     precision=None, row_cap=128):
    """Eval-mode TemporalPooling forward.

    io_dtype:  optional narrower storage dtype (e.g. jnp.bfloat16) for x and the
               output; the kernel upcasts to f32 immediately and accumulates in
               f32.  Halves the HBM traffic (best when x is already that dtype).
    precision: optional jax.lax.Precision for the 1x1-conv matmul (None keeps
               the backend default, which meets the demo's 1e-4 tolerance).
    """
    N, C_in, L = x.shape
    C_out = conv_w.shape[0]
    k = int(kernel_size)
    L_p = L // k
    L_out = L_p * k
    assert L_out > 0, "sequence length must be >= kernel_size"
    if L_out != L:                      # AvgPool1d drops the tail when L % k != 0
        x = x[:, :, :L_out]

    io_dtype = jnp.dtype(io_dtype) if io_dtype is not None else jnp.dtype(x.dtype)
    itemsize = io_dtype.itemsize
    row_align = 8 * max(1, 4 // itemsize)            # (8,128) f32 / (16,128) bf16 tiles

    if batch_block is not None:
        NB = int(batch_block)
        if N % NB != 0:
            raise ValueError(f"batch_block={NB} must divide the batch size N={N}")
        if NB != N and (NB * C_in % row_align or NB * C_out % row_align):
            raise ValueError(
                f"batch_block={NB} gives block rows ({NB * C_in} in / {NB * C_out} "
                f"out) that are not multiples of {row_align} (required for "
                f"{io_dtype} tiles)")
    else:
        NB = _pick_batch_block(N, C_in, C_out, L_out, k,
                               in_itemsize=itemsize, out_itemsize=itemsize,
                               row_align=row_align, row_cap=row_cap)
    RB_in, RB_out = NB * C_in, NB * C_out

    # ---- fold parameters (eval-mode BN) and build small constant tables ----
    w2d = conv_w.reshape(C_out, C_in).astype(jnp.float32)
    w_bd = jnp.kron(jnp.eye(NB, dtype=jnp.float32), w2d)                    # (RB_out, RB_in)
    scale = bn_gamma / jnp.sqrt(bn_var + eps)
    shift = bn_beta - bn_mean * scale
    affine = jnp.stack([conv_b.astype(jnp.float32),
                        scale.astype(jnp.float32),
                        shift.astype(jnp.float32)], axis=1)                 # (C_out, 3)
    affine = jnp.tile(affine, (NB, 1))                                      # (RB_out, 3)
    lanes = _lane_constants(L_out, k)                                       # (k+3, L_out)

    # Batch and channel rows merged (free metadata reshape): channels on
    # sublanes, time on lanes.
    x2 = x.reshape(N * C_in, L_out)
    if x2.dtype != io_dtype:
        x2 = x2.astype(io_dtype)

    # ---- explicit, generation-aware VMEM limit with headroom ---------------
    cap = _vmem_capacity_bytes()
    est = _vmem_step_bytes(NB, C_in, C_out, L_out, k, itemsize, itemsize)
    vmem_limit = int(min(cap // 2, max(2 * est, 16 << 20)))

    flops = (2 * N * C_out * RB_in * L_out
             + N * max(C_in, C_out) * L_out * (4 * max(1, k.bit_length()) + 12))
    bytes_accessed = (x2.size * itemsize + N * C_out * L_out * itemsize
                      + (w_bd.size + affine.size + lanes.size) * 4)

    out2 = pl.pallas_call(
        functools.partial(_tp_kernel, k=k, precision=precision),
        out_shape=jax.ShapeDtypeStruct((N * C_out, L_out), io_dtype),
        grid_spec=pltpu.PrefetchScalarGridSpec(
            num_scalar_prefetch=0,
            grid=(N // NB,),
            in_specs=[
                pl.BlockSpec((RB_in, L_out), lambda i: (i, 0)),       # x rows for this block
                pl.BlockSpec((RB_out, RB_in), lambda i: (0, 0)),      # block-diag conv weight
                pl.BlockSpec((RB_out, 3), lambda i: (0, 0)),          # [bias | bn scale | bn shift]
                pl.BlockSpec((k + 3, L_out), lambda i: (0, 0)),       # phase masks + lerp weights
            ],
            out_specs=pl.BlockSpec((RB_out, L_out), lambda i: (i, 0)),
        ),
        compiler_params=pltpu.CompilerParams(
            dimension_semantics=("parallel",),
            vmem_limit_bytes=vmem_limit),
        cost_estimate=pl.CostEstimate(flops=int(flops), transcendentals=0,
                                      bytes_accessed=int(bytes_accessed)),
    )(x2, w_bd, affine, lanes)

    return out2.reshape(N, C_out, L_out)


# --------------------------------------------------------------------------- #
# Pure-JAX reference & demo                                                    #
# --------------------------------------------------------------------------- #
def _reference(x, conv_w, conv_b, gamma, beta, mean, var, k, eps=1e-5):
    """Plain-JAX mirror of the PyTorch forward (eval mode), for verification."""
    N, C_in, L = x.shape
    C_out = conv_w.shape[0]
    L_p = L // k
    L_out = L_p * k
    pooled = x[:, :, :L_out].reshape(N, C_in, L_p, k).mean(-1)
    z = jnp.einsum('oc,ncl->nol', conv_w.reshape(C_out, C_in), pooled) + conv_b[None, :, None]
    a = jnp.maximum(z, 0.0)
    y = ((a - mean[None, :, None]) / jnp.sqrt(var + eps)[None, :, None]
         * gamma[None, :, None] + beta[None, :, None])
    src = jnp.arange(L_out) * (L_p - 1) / (L_out - 1)
    i0 = jnp.floor(src).astype(jnp.int32)
    i1 = jnp.minimum(i0 + 1, L_p - 1)
    frac = (src - i0).astype(y.dtype)
    return y[:, :, i0] * (1.0 - frac) + y[:, :, i1] * frac


if __name__ == "__main__":
    # Small shapes consistent with the module.  L is a multiple of 128 so every
    # block (input and output) is lane-dense on the TPU.
    N, C_IN, C_OUT, L, K = 8, 4, 4, 256, 2

    key = jax.random.PRNGKey(0)
    kx, kw, kb = jax.random.split(key, 3)

    x = jax.random.normal(kx, (N, C_IN, L), dtype=jnp.float32)
    conv_w = jax.random.normal(kw, (C_OUT, C_IN, 1), dtype=jnp.float32) * 0.5
    conv_b = jax.random.normal(kb, (C_OUT,), dtype=jnp.float32) * 0.1

    # Non-trivial eval-mode BatchNorm statistics (exercises the scale/shift fold).
    bn_gamma = jnp.full((C_OUT,), 1.2, jnp.float32)
    bn_beta = jnp.full((C_OUT,), 0.05, jnp.float32)
    bn_mean = jnp.full((C_OUT,), 0.10, jnp.float32)
    bn_var = jnp.full((C_OUT,), 0.90, jnp.float32)

    # --- fp32 path (strict tolerance); heuristic picks NB=2 -> 4 grid steps ---
    out = temporal_pooling(x, conv_w, conv_b, bn_gamma, bn_beta, bn_mean, bn_var,
                           kernel_size=K)
    out = jax.block_until_ready(out)
    ref = _reference(x, conv_w, conv_b, bn_gamma, bn_beta, bn_mean, bn_var, K)
    assert out.shape == (N, C_OUT, (L // K) * K)
    err = jnp.max(jnp.abs(out - ref))
    assert jnp.allclose(out, ref, atol=1e-4, rtol=1e-4), f"fp32 max abs err = {err}"

    # --- bf16 storage path (half the HBM traffic; f32 compute inside) ---------
    out_bf = temporal_pooling(x.astype(jnp.bfloat16), conv_w, conv_b,
                              bn_gamma, bn_beta, bn_mean, bn_var,
                              kernel_size=K, io_dtype=jnp.bfloat16)
    out_bf = jax.block_until_ready(out_bf).astype(jnp.float32)
    ref_bf = _reference(x.astype(jnp.bfloat16).astype(jnp.float32),
                        conv_w, conv_b, bn_gamma, bn_beta, bn_mean, bn_var, K)
    err_bf = jnp.max(jnp.abs(out_bf - ref_bf))
    assert jnp.allclose(out_bf, ref_bf, atol=3e-2, rtol=3e-2), \
        f"bf16 max abs err = {err_bf}"

    print("KERNEL_OK")
</pallas_src>

<mosaic_0001>
module attributes {stable_mosaic.version = 11 : i64} {
  func.func @_tp_kernel(%arg0: i32, %arg1: memref<8x256xf32, #tpu.memory_space<vmem>>, %arg2: memref<8x8xf32, #tpu.memory_space<vmem>>, %arg3: memref<8x3xf32, #tpu.memory_space<vmem>>, %arg4: memref<5x256xf32, #tpu.memory_space<vmem>>, %arg5: memref<8x256xf32, #tpu.memory_space<vmem>>) attributes {dimension_semantics = [#tpu.dimension_semantics<parallel>], iteration_bounds = array<i64: 4>, scalar_prefetch = 0 : i64, scratch_operands = 0 : i64, tpu.core_type = #tpu.core_type<tc>, window_params = [{transform_indices = @transform_0, window_bounds = array<i64: 8, 256>}, {pipeline_mode = #tpu.pipeline_mode<synchronous>, transform_indices = @transform_1, window_bounds = array<i64: 8, 8>}, {pipeline_mode = #tpu.pipeline_mode<synchronous>, transform_indices = @transform_2, window_bounds = array<i64: 8, 3>}, {pipeline_mode = #tpu.pipeline_mode<synchronous>, transform_indices = @transform_3, window_bounds = array<i64: 5, 256>}, {transform_indices = @transform_4, window_bounds = array<i64: 8, 256>}]} {
    %c0 = arith.constant 0 : index
    %c0_0 = arith.constant 0 : index
    %0 = vector.load %arg1[%c0, %c0_0] : memref<8x256xf32, #tpu.memory_space<vmem>>, vector<8x256xf32>
    %c255_i32 = arith.constant 255 : i32
    %1 = tpu.dynamic_rotate %0 by %c255_i32 dim 1 : vector<8x256xf32>, i32 -> vector<8x256xf32>
    %2 = arith.addf %0, %1 : vector<8x256xf32>
    %c0_1 = arith.constant 0 : index
    %c0_2 = arith.constant 0 : index
    %3 = vector.load %arg4[%c0_1, %c0_2] : memref<5x256xf32, #tpu.memory_space<vmem>>, vector<1x256xf32>
    %4 = vector.broadcast %3 : vector<1x256xf32> to vector<8x256xf32>
    %5 = arith.mulf %4, %2 : vector<8x256xf32>
    %c1_i32 = arith.constant 1 : i32
    %6 = tpu.dynamic_rotate %5 by %c1_i32 dim 1 : vector<8x256xf32>, i32 -> vector<8x256xf32>
    %7 = arith.addf %5, %6 : vector<8x256xf32>
    %c0_3 = arith.constant 0 : index
    %c0_4 = arith.constant 0 : index
    %8 = vector.load %arg2[%c0_3, %c0_4] : memref<8x8xf32, #tpu.memory_space<vmem>>, vector<8x8xf32>
    %cst = arith.constant dense<0.000000e+00> : vector<8x256xf32>
    %9 = tpu.matmul %8, %7, %cst {dimension_numbers = #tpu.dot_dimension_numbers<[1], [0], [0], [1], [0, 0, 1, 1], [], []>} : vector<8x8xf32>, vector<8x256xf32>, vector<8x256xf32> -> vector<8x256xf32>
    %c0_5 = arith.constant 0 : index
    %c0_6 = arith.constant 0 : index
    %10 = vector.load %arg3[%c0_5, %c0_6] : memref<8x3xf32, #tpu.memory_space<vmem>>, vector<8x1xf32>
    %11 = vector.broadcast %10 : vector<8x1xf32> to vector<8x256xf32>
    %12 = arith.addf %9, %11 : vector<8x256xf32>
    %cst_7 = arith.constant 0.000000e+00 : f32
    %13 = vector.broadcast %cst_7 : f32 to vector<8x256xf32>
    %14 = arith.maximumf %12, %13 : vector<8x256xf32>
    %c0_8 = arith.constant 0 : index
    %c1 = arith.constant 1 : index
    %15 = vector.load %arg3[%c0_8, %c1] : memref<8x3xf32, #tpu.memory_space<vmem>>, vector<8x1xf32>
    %16 = vector.broadcast %15 : vector<8x1xf32> to vector<8x256xf32>
    %17 = arith.mulf %14, %16 : vector<8x256xf32>
    %c0_9 = arith.constant 0 : index
    %c2 = arith.constant 2 : index
    %18 = vector.load %arg3[%c0_9, %c2] : memref<8x3xf32, #tpu.memory_space<vmem>>, vector<8x1xf32>
    %19 = vector.broadcast %18 : vector<8x1xf32> to vector<8x256xf32>
    %20 = arith.addf %17, %19 : vector<8x256xf32>
    %c2_10 = arith.constant 2 : index
    %c0_11 = arith.constant 0 : index
    %21 = vector.load %arg4[%c2_10, %c0_11] : memref<5x256xf32, #tpu.memory_space<vmem>>, vector<1x256xf32>
    %c3 = arith.constant 3 : index
    %c0_12 = arith.constant 0 : index
    %22 = vector.load %arg4[%c3, %c0_12] : memref<5x256xf32, #tpu.memory_space<vmem>>, vector<1x256xf32>
    %c4 = arith.constant 4 : index
    %c0_13 = arith.constant 0 : index
    %23 = vector.load %arg4[%c4, %c0_13] : memref<5x256xf32, #tpu.memory_space<vmem>>, vector<1x256xf32>
    %24 = vector.broadcast %22 : vector<1x256xf32> to vector<8x256xf32>
    %25 = arith.mulf %24, %20 : vector<8x256xf32>
    %c2_i32 = arith.constant 2 : i32
    %26 = tpu.dynamic_rotate %20 by %c2_i32 dim 1 : vector<8x256xf32>, i32 -> vector<8x256xf32>
    %27 = vector.broadcast %21 : vector<1x256xf32> to vector<8x256xf32>
    %28 = arith.mulf %27, %26 : vector<8x256xf32>
    %29 = arith.addf %25, %28 : vector<8x256xf32>
    %c254_i32 = arith.constant 254 : i32
    %30 = tpu.dynamic_rotate %20 by %c254_i32 dim 1 : vector<8x256xf32>, i32 -> vector<8x256xf32>
    %31 = vector.broadcast %23 : vector<1x256xf32> to vector<8x256xf32>
    %32 = arith.mulf %31, %30 : vector<8x256xf32>
    %33 = arith.addf %29, %32 : vector<8x256xf32>
    %c0_14 = arith.constant 0 : index
    %c0_15 = arith.constant 0 : index
    %34 = vector.load %arg5[%c0_14, %c0_15] : memref<8x256xf32, #tpu.memory_space<vmem>>, vector<8x256xf32>
    tpu.vector_store %arg5[%c0_14, %c0_15], %33 {strides = array<i32>} : memref<8x256xf32, #tpu.memory_space<vmem>>, vector<8x256xf32>,
    return
  }
  func.func @transform_0(%arg0: i32) -> (i32, i32) {
    %c0_i32 = arith.constant 0 : i32
    %c0_i32_0 = arith.constant 0 : i32
    return %arg0, %c0_i32 : i32, i32
  }
  func.func @transform_1(%arg0: i32) -> (i32, i32) {
    %c0_i32 = arith.constant 0 : i32
    %c0_i32_0 = arith.constant 0 : i32
    %c0_i32_1 = arith.constant 0 : i32
    return %c0_i32, %c0_i32_0 : i32, i32
  }
  func.func @transform_2(%arg0: i32) -> (i32, i32) {
    %c0_i32 = arith.constant 0 : i32
    %c0_i32_0 = arith.constant 0 : i32
    %c0_i32_1 = arith.constant 0 : i32
    return %c0_i32, %c0_i32_0 : i32, i32
  }
  func.func @transform_3(%arg0: i32) -> (i32, i32) {
    %c0_i32 = arith.constant 0 : i32
    %c0_i32_0 = arith.constant 0 : i32
    %c0_i32_1 = arith.constant 0 : i32
    return %c0_i32, %c0_i32_0 : i32, i32
  }
  func.func @transform_4(%arg0: i32) -> (i32, i32) {
    %c0_i32 = arith.constant 0 : i32
    %c0_i32_0 = arith.constant 0 : i32
    return %arg0, %c0_i32 : i32, i32
  }
}

</mosaic_0001>

<llo_original>
// kernel: tpu_custom_call.1
$region0: #{tpu_custom_call.1}
  #allocation0 [shape = 'u32[]', space=smem, size = 0x4, offset = 0x4, fixed_abs, tag = 'smem constant byte address 0x4 - core index']
  #allocation1 [shape = 'u32[144,128]{1,0:T(1,128)}', space=vmem, size = 0x12000, scoped, tag = 'internal scratch']
  %s0 = inlined_call_operand.hbm [shape: f32[32,256], index: 0, kind: input, shape index: {}]
  %s1 = inlined_call_operand.hbm [shape: f32[8,8], index: 1, kind: input, shape index: {}]
  %s2 = inlined_call_operand.vmem [shape: f32[8,3], index: 2, kind: input, shape index: {}]
  %s3 = inlined_call_operand.vmem [shape: f32[5,256], index: 3, kind: input, shape index: {}]
  %s4 = inlined_call_operand.hbm [shape: f32[32,256], index: 4, kind: output, shape index: {}]
  %s5 = sld [smem:[#allocation0]]
  $region57: #{tpu_custom_call.1} parent=0
    _
  %s7 = ssub.s32 1, %s5
  %s8 = scalar_select 0, %s7, %s5
  $region1: #{tpu_custom_call.1} parent=0
    #allocation2 [shape = 'u8[16384]{0}', space=vmem, size = 0x4000, scoped, tag = 'input window, operand 0']
    #allocation3 [shape = 's32[2]{0}', space=sflag, size = 0x8, scoped, tag = 'scoped memory for tpu_custom_call.1']
    #allocation4 [shape = 's32[2]{0}', space=sflag, size = 0x8, scoped, tag = 'scoped memory for tpu_custom_call.1']
    #allocation5 [shape = 'u8[4096]{0}', space=vmem, size = 0x1000, scoped, tag = 'input window, operand 1, single buffered']
    #allocation6 [shape = 's32[1]{0}', space=sflag, size = 0x4, scoped, tag = 'scoped memory for tpu_custom_call.1']
    #allocation7 [shape = 'u8[16384]{0}', space=vmem, size = 0x4000, scoped, tag = 'output window, operand 0']
    %9 = vsyncpa [#allocation3], 0
    %s10 = scalar_lea.sflag [#allocation3], 1
    %11 = vsyncpa %s10, 0
    %12 = vsyncpa [#allocation6], 0
    %13 = vsyncpa [#allocation4], 0
    %s14 = scalar_lea.sflag [#allocation4], 1
    %15 = vsyncpa %s14, 0
    loop: start=0, step=1, limit=6
    $region2: #{tpu_custom_call.1} parent=1 // loop_pre_header
      _
    $region3: #{tpu_custom_call.1} parent=1 // loop_header
      %s17 = sphi 0, %s21
      %p18 = scmp.ge.s32.totalorder %s17, 6
      %s27 = sphi 0, %s29
      %s30 = sphi 0, %s27
      %s31 = sphi 0, %s30
      %s47 = sphi 0, %s31
      %s51 = sphi 0, %s51
      %s53 = sphi 0, %s51
      %s54 = sphi 0, %s53
      %s68 = sphi 0, %s54
      %s72 = sphi 0, %s72
      %s74 = sphi 0, %s72
      %s75 = sphi 0, %s74
      %s89 = sphi 0, %s75
      %s93 = sphi 0, %s93
      %s95 = sphi 0, %s93
      %s96 = sphi 0, %s95
      %s110 = sphi 0, %s96
      %s116 = sphi 0, %s118
      %s119 = sphi 0, %s116
      %s120 = sphi 0, %s119
      %s136 = sphi 0, %s120
    $region4: #{tpu_custom_call.1} parent=1 // loop_header_branch
      %20 = sbr.rel (%p18) target = $region8
    $region5: #{tpu_custom_call.1} parent=1 // loop_body
      %s22 = ssub.s32 %s17, 1
      %s23 = ssub.s32 %s17, 2
      %s24 = sadd.s32 %s17, 1
      %s25 = ssub.s32 %s17, %s24
      %p26 = scmp.eq.s32.totalorder %s25, 0
      %s28 = sadd.s32 %s27, 1
      %s29 = scalar_select %p26, %s27, %s28
      %p32 = pneg %p26
      %p33 = scmp.eq.s32.totalorder %s17, 3
      %p34 = por %p32, %p33
      %p35 = scmp.ne.s32.totalorder %s27, %s30
      %p36 = scmp.eq.s32.totalorder %s17, 0
      %p37 = por %p35, %p36
      %p38 = scmp.ne.s32.totalorder %s27, %s30
      %p39 = scmp.eq.s32.totalorder %s22, 3
      %p40 = por %p38, %p39
      %p41 = scmp.ne.s32.totalorder %s30, %s31
      %p42 = scmp.eq.s32.totalorder %s22, 0
      %p43 = por %p41, %p42
      %p44 = scmp.ne.s32.totalorder %s30, %s31
      %p45 = scmp.eq.s32.totalorder %s23, 3
      %p46 = por %p44, %p45
      %p48 = scmp.ne.s32.totalorder %s31, %s47
      %p49 = scmp.eq.s32.totalorder %s23, 0
      %p50 = por %p48, %p49
      %s52 = sadd.s32 %s51, 1
      %p55 = scmp.eq.s32.totalorder %s17, 3
      %p56 = scmp.ne.s32.totalorder %s51, %s53
      %p57 = scmp.eq.s32.totalorder %s17, 0
      %p58 = por %p56, %p57
      %p59 = scmp.ne.s32.totalorder %s51, %s53
      %p60 = scmp.eq.s32.totalorder %s22, 3
      %p61 = por %p59, %p60
      %p62 = scmp.ne.s32.totalorder %s53, %s54
      %p63 = scmp.eq.s32.totalorder %s22, 0
      %p64 = por %p62, %p63
      %p65 = scmp.ne.s32.totalorder %s53, %s54
      %p66 = scmp.eq.s32.totalorder %s23, 3
      %p67 = por %p65, %p66
      %p69 = scmp.ne.s32.totalorder %s54, %s68
      %p70 = scmp.eq.s32.totalorder %s23, 0
      %p71 = por %p69, %p70
      %s73 = sadd.s32 %s72, 1
      %p76 = scmp.eq.s32.totalorder %s17, 3
      %p77 = scmp.ne.s32.totalorder %s72, %s74
      %p78 = scmp.eq.s32.totalorder %s17, 0
      %p79 = por %p77, %p78
      %p80 = scmp.ne.s32.totalorder %s72, %s74
      %p81 = scmp.eq.s32.totalorder %s22, 3
      %p82 = por %p80, %p81
      %p83 = scmp.ne.s32.totalorder %s74, %s75
      %p84 = scmp.eq.s32.totalorder %s22, 0
      %p85 = por %p83, %p84
      %p86 = scmp.ne.s32.totalorder %s74, %s75
      %p87 = scmp.eq.s32.totalorder %s23, 3
      %p88 = por %p86, %p87
      %p90 = scmp.ne.s32.totalorder %s75, %s89
      %p91 = scmp.eq.s32.totalorder %s23, 0
      %p92 = por %p90, %p91
      %s94 = sadd.s32 %s93, 1
      %p97 = scmp.eq.s32.totalorder %s17, 3
      %p98 = scmp.ne.s32.totalorder %s93, %s95
      %p99 = scmp.eq.s32.totalorder %s17, 0
      %p100 = por %p98, %p99
      %p101 = scmp.ne.s32.totalorder %s93, %s95
      %p102 = scmp.eq.s32.totalorder %s22, 3
      %p103 = por %p101, %p102
      %p104 = scmp.ne.s32.totalorder %s95, %s96
      %p105 = scmp.eq.s32.totalorder %s22, 0
      %p106 = por %p104, %p105
      %p107 = scmp.ne.s32.totalorder %s95, %s96
      %p108 = scmp.eq.s32.totalorder %s23, 3
      %p109 = por %p107, %p108
      %p111 = scmp.ne.s32.totalorder %s96, %s110
      %p112 = scmp.eq.s32.totalorder %s23, 0
      %p113 = por %p111, %p112
      %s114 = ssub.s32 %s17, %s24
      %p115 = scmp.eq.s32.totalorder %s114, 0
      %s117 = sadd.s32 %s116, 1
      %s118 = scalar_select %p115, %s116, %s117
      %p121 = pneg %p115
      %p122 = scmp.eq.s32.totalorder %s17, 3
      %p123 = por %p121, %p122
      %p124 = scmp.ne.s32.totalorder %s116, %s119
      %p125 = scmp.eq.s32.totalorder %s17, 0
      %p126 = por %p124, %p125
      %p127 = scmp.ne.s32.totalorder %s116, %s119
      %p128 = scmp.eq.s32.totalorder %s22, 3
      %p129 = por %p127, %p128
      %p130 = scmp.ne.s32.totalorder %s119, %s120
      %p131 = scmp.eq.s32.totalorder %s22, 0
      %p132 = por %p130, %p131
      %p133 = scmp.ne.s32.totalorder %s119, %s120
      %p134 = scmp.eq.s32.totalorder %s23, 3
      %p135 = por %p133, %p134
      %p137 = scmp.ne.s32.totalorder %s120, %s136
      %p138 = scmp.eq.s32.totalorder %s23, 0
      %p139 = por %p137, %p138
      %p140 = scmp.le.s32.totalorder 1, %s17
      %p141 = scmp.lt.s32.totalorder %s17, 5
      %p142 = pnand %p140, %p141
      %p143 = pneg %p142
      // Predicated region
      $region9: #{tpu_custom_call.1} parent=5 // pred_check
        _
      $region10: #{tpu_custom_call.1} parent=5 // pred_check_branch
        %145 = sbr.rel (%p142) target = $region12
      $region11: #{tpu_custom_call.1} parent=5 // pred_region
        %s146 = ssub.s32 %s17, 1
        // Predicated region
        $region13: #{tpu_custom_call.1} parent=11 // pred_check
          %p147 = pneg %p64
        $region14: #{tpu_custom_call.1} parent=11 // pred_check_branch
          %149 = sbr.rel (%p147) target = $region16
        $region15: #{tpu_custom_call.1} parent=11 // pred_region
          %s151 = ssub.s32 128, 128
          %152 = vsyncadd [#allocation6], %s151
          %s154 = sshll.u32 [#allocation5], 4
          %s155 = int_to_ptr.vmem [resolvable:$true] %s154
          %157 = dma.hbm_to_vmem [thread:$0]  %s1, 128, %s155, [#allocation6]
        $region16: #{tpu_custom_call.1} parent=11 // pred_fallthru
          _
        // Predicated region
        $region17: #{tpu_custom_call.1} parent=11 // pred_check
          %p158 = pneg %p85
        $region18: #{tpu_custom_call.1} parent=11 // pred_check_branch
          %160 = sbr.rel (%p158) target = $region20
        $region19: #{tpu_custom_call.1} parent=11 // pred_region
          _
        $region20: #{tpu_custom_call.1} parent=11 // pred_fallthru
          _
        // Predicated region
        $region21: #{tpu_custom_call.1} parent=11 // pred_check
          %p161 = pneg %p106
        $region22: #{tpu_custom_call.1} parent=11 // pred_check_branch
          %163 = sbr.rel (%p161) target = $region24
        $region23: #{tpu_custom_call.1} parent=11 // pred_region
          _
        $region24: #{tpu_custom_call.1} parent=11 // pred_fallthru
          _
      $region12: #{tpu_custom_call.1} parent=5 // pred_fallthru
        _
      %p164 = scmp.lt.s32.totalorder %s17, 4
      // Predicated region
      $region25: #{tpu_custom_call.1} parent=5 // pred_check
        %p165 = pneg %p164
      $region26: #{tpu_custom_call.1} parent=5 // pred_check_branch
        %167 = sbr.rel (%p165) target = $region28
      $region27: #{tpu_custom_call.1} parent=5 // pred_region
        // Predicated region
        $region29: #{tpu_custom_call.1} parent=27 // pred_check
          %p168 = pneg %p37
        $region30: #{tpu_custom_call.1} parent=27 // pred_check_branch
          %170 = sbr.rel (%p168) target = $region32
        $region31: #{tpu_custom_call.1} parent=27 // pred_region
          %s171 = sand.u32 %s27, 1
          %s172 = scalar_lea.sflag [#allocation3], %s171
          %s173 = sand.u32 %s27, 1
          %s174 = smul.addr %s173, 16
          %s175 = scalar_lea.vmem [#allocation2], %s174
          %s177 = ssub.s32 256, 256
          %178 = vsyncadd %s172, %s177
          %s179 = smul.addr %s17, 2
          %s180 = smul.addr %s179, 128
          %s181 = scalar_lea.hbm %s0, %s180
          %s183 = sshll.u32 %s175, 4
          %s184 = int_to_ptr.vmem [resolvable:$true] %s183
          %186 = dma.hbm_to_vmem [thread:$0]  %s181, 256, %s184, %s172
        $region32: #{tpu_custom_call.1} parent=27 // pred_fallthru
          _
      $region28: #{tpu_custom_call.1} parent=5 // pred_fallthru
        _
      %p187 = scmp.le.s32.totalorder 1, %s17
      %p188 = scmp.lt.s32.totalorder %s17, 5
      %p189 = pnand %p187, %p188
      %p190 = pneg %p189
      // Predicated region
      $region33: #{tpu_custom_call.1} parent=5 // pred_check
        _
      $region34: #{tpu_custom_call.1} parent=5 // pred_check_branch
        %192 = sbr.rel (%p189) target = $region36
      $region35: #{tpu_custom_call.1} parent=5 // pred_region
        %s193 = ssub.s32 %s17, 1
        %s194 = sand.u32 %s30, 1
        %s195 = scalar_lea.sflag [#allocation3], %s194
        %s196 = sand.u32 %s30, 1
        %s197 = smul.addr %s196, 16
        %s198 = scalar_lea.vmem [#allocation2], %s197
        // Predicated region
        $region37: #{tpu_custom_call.1} parent=35 // pred_check
          %p199 = pneg %p43
        $region38: #{tpu_custom_call.1} parent=35 // pred_check_branch
          %201 = sbr.rel (%p199) target = $region40
        $region39: #{tpu_custom_call.1} parent=35 // pred_region
          %202 = dma.done %s195, 256
        $region40: #{tpu_custom_call.1} parent=35 // pred_fallthru
          _
        // Predicated region
        $region41: #{tpu_custom_call.1} parent=35 // pred_check
          %p203 = pneg %p64
        $region42: #{tpu_custom_call.1} parent=35 // pred_check_branch
          %205 = sbr.rel (%p203) target = $region44
        $region43: #{tpu_custom_call.1} parent=35 // pred_region
          %206 = dma.done [#allocation6], 128
        $region44: #{tpu_custom_call.1} parent=35 // pred_fallthru
          _
        %s207 = sand.u32 %s30, 1
        %s208 = scalar_lea.sflag [#allocation3], %s207
        %s209 = sand.u32 %s30, 1
        %s210 = smul.addr %s209, 16
        %s211 = scalar_lea.vmem [#allocation2], %s210
        %p212 = pneg %p43
        %p213 = pneg %p40
        %p214 = pneg %p64
        %p215 = pneg %p61
        %p216 = pneg %p85
        %p217 = pneg %p82
        %p218 = pneg %p106
        %p219 = pneg %p103
        %p220 = pneg %p132
        %p221 = pneg %p129
        %s222 = sand.u32 %s119, 1
        %s223 = scalar_lea.sflag [#allocation4], %s222
        %s224 = sand.u32 %s119, 1
        %s225 = smul.addr %s224, 16
        %s226 = scalar_lea.vmem [#allocation7], %s225
        %v227 = vld [vmem:[%s198] sm:$0xff]
        %v228 = vld [vmem:[%s198 + $0x8] sm:$0xff]
        %229 = vrot.lane.b32.xlu0 %v227, 127
        %v230 = vpop.permute.xlu0 %229
        %231 = vrot.lane.b32.xlu0 %v228, 127
        %v232 = vpop.permute.xlu0 %231
        %v233 = vlaneseq
        %v234 = vand.u32 %v233, 127
        %vm235 = vcmp.lt.s32.totalorder %v234, 127
        %v236 = vsel %vm235, %v230, %v232
        %v237 = vsel %vm235, %v232, %v230
        %v238 = vadd.f32 %v227, %v236
        %v239 = vadd.f32 %v228, %v237
        %v240 = vld [vmem:[%s3] ss:$8 sm:$0x3]
        %v242 = vlaneseq
        %v243 = vshrl.u32 %v242, 7
        %v244 = vsub.s32 0, %v243
        %v245 = vrot.slane %v240, %v244
        %v246 = vlaneseq
        %v247 = vshrl.u32 %v246, 7
        %v248 = vsub.s32 1, %v247
        %v249 = vrot.slane %v240, %v248
        %v252 = vmul.f32 %v245, %v238
        %v253 = vmul.f32 %v249, %v239
        %254 = vrot.lane.b32.xlu0 %v252, 1
        %v255 = vpop.permute.xlu0 %254
        %256 = vrot.lane.b32.xlu0 %v253, 1
        %v257 = vpop.permute.xlu0 %256
        %vm258 = vcmp.lt.s32.totalorder %v234, 1
        %v259 = vsel %vm258, %v255, %v257
        %v260 = vsel %vm258, %v257, %v255
        %v261 = vadd.f32 %v252, %v260
        %v262 = vadd.f32 %v253, %v259
        %v263 = vld [vmem:[#allocation5] sm:$0xff]
        %v264 = vld [vmem:[%s2] sm:$0xff]
        %266 = vset.pattern.permute.xlu0 0
        %267 = vperm.xlu0 %266, %v264
        %v268 = vpop.permute.xlu0 %267
        %vm270 = vcmask 64512
        %v272 = vsel %vm270, %v263, 0
        %274 = vmatprep.subr.mxu0 %v262
        %275 = vmatpush1.msra.mxu0 %v261
        %276 = vmatprep.subr.mxu0 0.0
        %277 = vmatpush1.msra.mxu0 0.0
        %278 = vmatprep.subr.mxu0 0.0
        %279 = vmatpush1.msra.mxu0 0.0
        %280 = vmatprep.subr.mxu0 0.0
        %281 = vmatpush1.msra.mxu0 0.0
        %282 = vmatprep.subr.mxu0 0.0
        %283 = vmatpush1.msra.mxu0 0.0
        %284 = vmatprep.subr.mxu0 0.0
        %285 = vmatpush1.msra.mxu0 0.0
        %286 = vmatprep.subr.mxu0 0.0
        %287 = vmatpush1.msra.mxu0 0.0
        %288 = vmatprep.subr.mxu0 0.0
        %289 = vmatpush1.msra.mxu0 0.0
        %290 = vmatprep.subr.mxu0 0.0
        %291 = vmatpush1.msra.mxu0 0.0
        %292 = vmatprep.subr.mxu0 0.0
        %293 = vmatpush1.msra.mxu0 0.0
        %294 = vmatprep.subr.mxu0 0.0
        %295 = vmatpush1.msra.mxu0 0.0
        %296 = vmatprep.subr.mxu0 0.0
        %297 = vmatpush1.msra.mxu0 0.0
        %298 = vmatprep.subr.mxu0 0.0
        %299 = vmatpush1.msra.mxu0 0.0
        %300 = vmatprep.subr.mxu0 0.0
        %301 = vmatpush1.msra.mxu0 0.0
        %302 = vmatprep.subr.mxu0 0.0
        %303 = vmatpush1.msra.mxu0 0.0
        %304 = vmatprep.subr.mxu0 0.0
        %305 = vmatpush1.msra.mxu0 0.0
        %306 = vmatprep.subr.mxu0 0.0
        %307 = vmatpush1.msra.mxu0 0.0
        %308 = vmatprep.subr.mxu0 0.0
        %309 = vmatpush1.msra.mxu0 0.0
        %310 = vmatprep.subr.mxu0 0.0
        %311 = vmatpush1.msra.mxu0 0.0
        %312 = vmatprep.subr.mxu0 0.0
        %313 = vmatpush1.msra.mxu0 0.0
        %314 = vmatprep.subr.mxu0 0.0
        %315 = vmatpush1.msra.mxu0 0.0
        %316 = vmatprep.subr.mxu0 0.0
        %317 = vmatpush1.msra.mxu0 0.0
        %318 = vmatprep.subr.mxu0 0.0
        %319 = vmatpush1.msra.mxu0 0.0
        %320 = vmatprep.subr.mxu0 0.0
        %321 = vmatpush1.msra.mxu0 0.0
        %322 = vmatprep.subr.mxu0 0.0
        %323 = vmatpush1.msra.mxu0 0.0
        %324 = vmatprep.subr.mxu0 0.0
        %325 = vmatpush1.msra.mxu0 0.0
        %326 = vmatprep.subr.mxu0 0.0
        %327 = vmatpush1.msra.mxu0 0.0
        %328 = vmatprep.subr.mxu0 0.0
        %329 = vmatpush1.msra.mxu0 0.0
        %330 = vmatprep.subr.mxu0 0.0
        %331 = vmatpush1.msra.mxu0 0.0
        %332 = vmatprep.subr.mxu0 0.0
        %333 = vmatpush1.msra.mxu0 0.0
        %334 = vmatprep.subr.mxu0 0.0
        %335 = vmatpush1.msra.mxu0 0.0
        %336 = vmatprep.subr.mxu0 0.0
        %337 = vmatpush1.msra.mxu0 0.0
        %338 = vmatprep.mubr.f32.mxu0 0.0
        %339 = vmatmul.mubr.f32.gmra.mrb[0].mxu0 %v272
        %v340 = vpop.f32.mrb[0].mxu0
        %v341 = vadd.f32 %v268, %v340
        %v342 = vpop.f32.mrb[0].mxu0
        %v343 = vadd.f32 %v268, %v342
        %344 = vdwg.mxu0
        %v345 = vmax.f32 %v341, 0.0
        %v346 = vmax.f32 %v343, 0.0
        %347 = vset.pattern.permute.xlu0 1
        %348 = vperm.xlu0 %347, %v264
        %v349 = vpop.permute.xlu0 %348
        %v351 = vmul.f32 %v345, %v349
        %v352 = vmul.f32 %v346, %v349
        %353 = vset.pattern.permute.xlu0 2
        %354 = vperm.xlu0 %353, %v264
        %v355 = vpop.permute.xlu0 %354
        %v357 = vadd.f32 %v351, %v355
        %v358 = vadd.f32 %v352, %v355
        %s359 = scalar_lea.vmem %s3, 2
        %v360 = vld [vmem:[%s359] ss:$8 sm:$0x3]
        %s361 = scalar_lea.vmem %s3, 3
        %v362 = vld [vmem:[%s361] ss:$8 sm:$0x3]
        %s363 = scalar_lea.vmem %s3, 4
        %v364 = vld [vmem:[%s363] ss:$8 sm:$0x3]
        %v366 = vlaneseq
        %v367 = vshrl.u32 %v366, 7
        %v368 = vsub.s32 0, %v367
        %v369 = vrot.slane %v362, %v368
        %v370 = vlaneseq
        %v371 = vshrl.u32 %v370, 7
        %v372 = vsub.s32 1, %v371
        %v373 = vrot.slane %v362, %v372
        %v376 = vmul.f32 %v369, %v357
        %v377 = vmul.f32 %v373, %v358
        %378 = vrot.lane.b32.xlu0 %v357, 2
        %v379 = vpop.permute.xlu0 %378
        %380 = vrot.lane.b32.xlu0 %v358, 2
        %v381 = vpop.permute.xlu0 %380
        %vm382 = vcmp.lt.s32.totalorder %v234, 2
        %v383 = vsel %vm382, %v379, %v381
        %v384 = vsel %vm382, %v381, %v379
        %v386 = vlaneseq
        %v387 = vshrl.u32 %v386, 7
        %v388 = vsub.s32 0, %v387
        %v389 = vrot.slane %v360, %v388
        %v390 = vlaneseq
        %v391 = vshrl.u32 %v390, 7
        %v392 = vsub.s32 1, %v391
        %v393 = vrot.slane %v360, %v392
        %v396 = vmul.f32 %v389, %v384
        %v397 = vmul.f32 %v393, %v383
        %v398 = vadd.f32 %v376, %v396
        %v399 = vadd.f32 %v377, %v397
        %400 = vrot.lane.b32.xlu0 %v357, 126
        %v401 = vpop.permute.xlu0 %400
        %402 = vrot.lane.b32.xlu0 %v358, 126
        %v403 = vpop.permute.xlu0 %402
        %vm404 = vcmp.lt.s32.totalorder %v234, 126
        %v405 = vsel %vm404, %v401, %v403
        %v406 = vsel %vm404, %v403, %v401
        %v408 = vlaneseq
        %v409 = vshrl.u32 %v408, 7
        %v410 = vsub.s32 0, %v409
        %v411 = vrot.slane %v364, %v410
        %v412 = vlaneseq
        %v413 = vshrl.u32 %v412, 7
        %v414 = vsub.s32 1, %v413
        %v415 = vrot.slane %v364, %v414
        %v418 = vmul.f32 %v411, %v405
        %v419 = vmul.f32 %v415, %v406
        %v420 = vadd.f32 %v398, %v418
        %v421 = vadd.f32 %v399, %v419
        %422 = vst [vmem:[%s226] sm:$0xff] %v420
        %423 = vst [vmem:[%s226 + $0x8] sm:$0xff] %v421
        %s424 = sand.u32 %s119, 1
        %s425 = scalar_lea.sflag [#allocation4], %s424
        %s426 = sand.u32 %s119, 1
        %s427 = smul.addr %s426, 16
        %s428 = scalar_lea.vmem [#allocation7], %s427
        // Predicated region
        $region45: #{tpu_custom_call.1} parent=35 // pred_check
          %p429 = pneg %p129
        $region46: #{tpu_custom_call.1} parent=35 // pred_check_branch
          %431 = sbr.rel (%p429) target = $region48
        $region47: #{tpu_custom_call.1} parent=35 // pred_region
          %s433 = ssub.s32 256, 256
          %434 = vsyncadd %s425, %s433
          %s435 = smul.addr %s22, 2
          %s436 = smul.addr %s435, 128
          %s437 = scalar_lea.hbm %s4, %s436
          %s439 = sshll.u32 %s428, 4
          %s440 = int_to_ptr.vmem [resolvable:$true] %s439
          %442 = dma.vmem_to_hbm [thread:$0]  %s440, 256, %s437, %s425
        $region48: #{tpu_custom_call.1} parent=35 // pred_fallthru
          _
      $region36: #{tpu_custom_call.1} parent=5 // pred_fallthru
        _
      %p443 = scmp.le.s32.totalorder 2, %s17
      // Predicated region
      $region49: #{tpu_custom_call.1} parent=5 // pred_check
        %p444 = pneg %p443
      $region50: #{tpu_custom_call.1} parent=5 // pred_check_branch
        %446 = sbr.rel (%p444) target = $region52
      $region51: #{tpu_custom_call.1} parent=5 // pred_region
        %s447 = ssub.s32 %s17, 2
        // Predicated region
        $region53: #{tpu_custom_call.1} parent=51 // pred_check
          %p448 = pneg %p135
        $region54: #{tpu_custom_call.1} parent=51 // pred_check_branch
          %450 = sbr.rel (%p448) target = $region56
        $region55: #{tpu_custom_call.1} parent=51 // pred_region
          %s451 = sand.u32 %s120, 1
          %s452 = scalar_lea.sflag [#allocation4], %s451
          %s453 = sand.u32 %s120, 1
          %s454 = smul.addr %s453, 16
          %s455 = scalar_lea.vmem [#allocation7], %s454
          %456 = dma.done %s452, 256
        $region56: #{tpu_custom_call.1} parent=51 // pred_fallthru
          _
      $region52: #{tpu_custom_call.1} parent=5 // pred_fallthru
        _
    $region6: #{tpu_custom_call.1} parent=1 // loop_footer
      %s21 = sadd.s32 1, %s17
    $region7: #{tpu_custom_call.1} parent=1 // loop_footer_branch
      %16 = sbr.rel target = $region3
    $region8: #{tpu_custom_call.1} parent=1 // loop_exit
      _
    %457 = vsyncpa [#allocation3], 1
    %s458 = scalar_lea.sflag [#allocation3], 1
    %459 = vsyncpa %s458, 1
    %460 = vsyncpa [#allocation6], 1
    %461 = vsyncpa [#allocation4], 1
    %s462 = scalar_lea.sflag [#allocation4], 1
    %463 = vsyncpa %s462, 1

</llo_original>
